<compile_context>
chip_gen: v5e
topology: v5e:2x2
jax: 0.10.0
libtpu: 0.0.40
codegen_flags: <defaults>
</compile_context>

<pallas_src>
import math

import jax
import jax.numpy as jnp
from jax.experimental import pallas as pl
from jax.experimental.pallas import tpu as pltpu

CRITIC_HIDDEN_LAYER_1 = 400
CRITIC_HIDDEN_LAYER_2 = 300


def _critic_kernel(s_ref, a_ref, w1_ref, b1_ref, w2a_ref, w2b_ref, b2_ref,
                   w3_ref, b3_ref, o_ref):
    # Cast activations to bf16 for the MXU; accumulate in f32.
    s = s_ref[...].astype(jnp.bfloat16)
    a = a_ref[...].astype(jnp.bfloat16)

    # fc1 + relu  (bias add / relu on the f32 accumulator)
    x1 = jnp.dot(s, w1_ref[...], preferred_element_type=jnp.float32)
    x1 = jnp.maximum(x1 + b1_ref[...], 0.0)

    # fc2 over concat(x1, action) == x1 @ W2a + action @ W2b, then relu
    x2 = (jnp.dot(x1.astype(jnp.bfloat16), w2a_ref[...],
                  preferred_element_type=jnp.float32)
          + jnp.dot(a, w2b_ref[...], preferred_element_type=jnp.float32)
          + b2_ref[...])
    x2 = jnp.maximum(x2, 0.0)

    # fc3: (TB,300)x(300,1) wastes the MXU -> VPU multiply + XLU lane reduce.
    q = jnp.sum(x2 * w3_ref[...], axis=-1, keepdims=True) + b3_ref[...]
    o_ref[...] = q.astype(o_ref.dtype)


def _nbytes(x):
    return math.prod(x.shape) * jnp.dtype(x.dtype).itemsize


def critic_forward(state, action, params, *, block_b=256):
    """state: (B, S) f32, action: (B, A) f32 -> (B, 1) f32."""
    w1t, b1, w2at, w2bt, b2, w3r, b3 = params
    B, S = state.shape
    A = action.shape[1]
    h1 = w1t.shape[1]
    h2 = w2at.shape[1]

    # Batch tile. If B <= block_b the block equals the full batch (always a
    # legal block shape); otherwise use a multiple-of-8 tile and pad B.
    TB = min(block_b, B)
    Bp = pl.cdiv(B, TB) * TB
    if Bp != B:
        pad = Bp - B
        state = jnp.pad(state, ((0, pad), (0, 0)))
        action = jnp.pad(action, ((0, pad), (0, 0)))
    grid = (Bp // TB,)

    def batch_spec(d):
        return pl.BlockSpec((TB, d), lambda i: (i, 0))

    def resident(shape):
        # Constant index_map: the block is re-used (no re-DMA) across steps.
        return pl.BlockSpec(shape, lambda i: (0, 0))

    inputs = (state, action, w1t, b1, w2at, w2bt, b2, w3r, b3)
    flops = 2 * Bp * (S * h1 + (h1 + A) * h2 + h2)
    bytes_accessed = sum(_nbytes(x) for x in inputs) + Bp * 1 * 4
    cost = pl.CostEstimate(flops=flops, transcendentals=0,
                           bytes_accessed=bytes_accessed)

    out = pl.pallas_call(
        _critic_kernel,
        out_shape=jax.ShapeDtypeStruct((Bp, 1), jnp.float32),
        grid=grid,
        in_specs=[
            batch_spec(S),            # state tile      (TB, S)
            batch_spec(A),            # action tile     (TB, A)
            resident(w1t.shape),      # W1^T            (S, h1)   bf16
            resident(b1.shape),       # b1              (1, h1)   f32
            resident(w2at.shape),     # W2a^T           (h1, h2)  bf16
            resident(w2bt.shape),     # W2b^T           (A, h2)   bf16
            resident(b2.shape),       # b2              (1, h2)   f32
            resident(w3r.shape),      # w3 row          (1, h2)   f32
            resident(b3.shape),       # b3              (1, 1)    f32
        ],
        out_specs=pl.BlockSpec((TB, 1), lambda i: (i, 0)),
        compiler_params=pltpu.CompilerParams(
            dimension_semantics=("parallel",)),
        cost_estimate=cost,
    )(*inputs)
    return out[:B]


def init_params(key, state_num, action_num):
    """Deterministic synthetic init mirroring the PyTorch module's shapes.

    Weight matrices are stored transposed ([in, out]) and in bfloat16; the fc3
    weight is stored as a (1, h2) row for the VPU head reduction.
    """
    h1, h2 = CRITIC_HIDDEN_LAYER_1, CRITIC_HIDDEN_LAYER_2
    ks = jax.random.split(key, 6)
    lim1 = 1.0 / math.sqrt(h1)   # hidden_init uses weight.size()[0] == out dim
    lim2 = 1.0 / math.sqrt(h2)
    # fc1: weight (h1, state_num) -> stored transposed (state_num, h1), bf16
    w1t = jax.random.uniform(ks[0], (state_num, h1), jnp.float32,
                             -lim1, lim1).astype(jnp.bfloat16)
    b1 = jax.random.uniform(ks[1], (1, h1), jnp.float32, -lim1, lim1)
    # fc2: weight (h2, h1 + action_num) -> split + transposed, bf16
    w2t = jax.random.uniform(ks[2], (h1 + action_num, h2), jnp.float32,
                             -lim2, lim2).astype(jnp.bfloat16)
    w2at, w2bt = w2t[:h1, :], w2t[h1:, :]
    b2 = jax.random.uniform(ks[3], (1, h2), jnp.float32, -lim2, lim2)
    # fc3: weight (1, h2) row, uniform(-0.003, 0.003), kept f32 (tiny)
    w3r = jax.random.uniform(ks[4], (1, h2), jnp.float32, -0.003, 0.003)
    b3 = jax.random.uniform(ks[5], (1, 1), jnp.float32, -0.003, 0.003)
    return (w1t, b1, w2at, w2bt, b2, w3r, b3)


def critic_ref(state, action, params):
    """Pure-JAX reference with the same bf16-operand / f32-accumulate recipe."""
    w1t, b1, w2at, w2bt, b2, w3r, b3 = params
    sb = state.astype(jnp.bfloat16)
    ab = action.astype(jnp.bfloat16)
    x = jnp.maximum(
        jnp.dot(sb, w1t, preferred_element_type=jnp.float32) + b1, 0.0)
    x = jnp.maximum(
        jnp.dot(x.astype(jnp.bfloat16), w2at,
                preferred_element_type=jnp.float32)
        + jnp.dot(ab, w2bt, preferred_element_type=jnp.float32)
        + b2, 0.0)
    return jnp.sum(x * w3r, axis=-1, keepdims=True) + b3


if __name__ == "__main__":
    # TODO(synk): norm1/norm2 (BatchNorm1d) exist in __init__ but are unused in
    # forward, so they are deliberately not part of the kernel.
    B, STATE_NUM, ACTION_NUM = 8, 32, 8
    key = jax.random.PRNGKey(0)
    k_s, k_a, k_p = jax.random.split(key, 3)
    state = jax.random.normal(k_s, (B, STATE_NUM), jnp.float32)
    action = jax.random.normal(k_a, (B, ACTION_NUM), jnp.float32)
    params = init_params(k_p, STATE_NUM, ACTION_NUM)

    out = jax.block_until_ready(critic_forward(state, action, params))
    ref = critic_ref(state, action, params)
    assert out.shape == (B, 1), out.shape
    assert jnp.allclose(out, ref, atol=2e-3, rtol=2e-3), (
        f"max abs diff {jnp.max(jnp.abs(out - ref))}")
    print("KERNEL_OK")
</pallas_src>

<mosaic_0001>
module attributes {stable_mosaic.version = 11 : i64} {
  func.func @_critic_kernel(%arg0: i32, %arg1: memref<8x32xf32, #tpu.memory_space<vmem>>, %arg2: memref<8x8xf32, #tpu.memory_space<vmem>>, %arg3: memref<32x400xbf16, #tpu.memory_space<vmem>>, %arg4: memref<1x400xf32, #tpu.memory_space<vmem>>, %arg5: memref<400x300xbf16, #tpu.memory_space<vmem>>, %arg6: memref<8x300xbf16, #tpu.memory_space<vmem>>, %arg7: memref<1x300xf32, #tpu.memory_space<vmem>>, %arg8: memref<1x300xf32, #tpu.memory_space<vmem>>, %arg9: memref<1x1xf32, #tpu.memory_space<vmem>>, %arg10: memref<8x1xf32, #tpu.memory_space<vmem>>) attributes {dimension_semantics = [#tpu.dimension_semantics<parallel>], iteration_bounds = array<i64: 1>, scalar_prefetch = 0 : i64, scratch_operands = 0 : i64, tpu.core_type = #tpu.core_type<tc>, window_params = [{transform_indices = @transform_0, window_bounds = array<i64: 8, 32>}, {transform_indices = @transform_1, window_bounds = array<i64: 8, 8>}, {pipeline_mode = #tpu.pipeline_mode<synchronous>, transform_indices = @transform_2, window_bounds = array<i64: 32, 400>}, {pipeline_mode = #tpu.pipeline_mode<synchronous>, transform_indices = @transform_3, window_bounds = array<i64: 1, 400>}, {pipeline_mode = #tpu.pipeline_mode<synchronous>, transform_indices = @transform_4, window_bounds = array<i64: 400, 300>}, {pipeline_mode = #tpu.pipeline_mode<synchronous>, transform_indices = @transform_5, window_bounds = array<i64: 8, 300>}, {pipeline_mode = #tpu.pipeline_mode<synchronous>, transform_indices = @transform_6, window_bounds = array<i64: 1, 300>}, {pipeline_mode = #tpu.pipeline_mode<synchronous>, transform_indices = @transform_7, window_bounds = array<i64: 1, 300>}, {pipeline_mode = #tpu.pipeline_mode<synchronous>, transform_indices = @transform_8, window_bounds = array<i64: 1, 1>}, {transform_indices = @transform_9, window_bounds = array<i64: 8, 1>}]} {
    %c0 = arith.constant 0 : index
    %c0_0 = arith.constant 0 : index
    %0 = vector.load %arg1[%c0, %c0_0] : memref<8x32xf32, #tpu.memory_space<vmem>>, vector<8x32xf32>
    %1 = arith.truncf %0 : vector<8x32xf32> to vector<8x32xbf16>
    %c0_1 = arith.constant 0 : index
    %c0_2 = arith.constant 0 : index
    %2 = vector.load %arg2[%c0_1, %c0_2] : memref<8x8xf32, #tpu.memory_space<vmem>>, vector<8x8xf32>
    %3 = arith.truncf %2 : vector<8x8xf32> to vector<8x8xbf16>
    %c0_3 = arith.constant 0 : index
    %c0_4 = arith.constant 0 : index
    %4 = vector.load %arg3[%c0_3, %c0_4] : memref<32x400xbf16, #tpu.memory_space<vmem>>, vector<32x400xbf16>
    %cst = arith.constant dense<0.000000e+00> : vector<8x400xf32>
    %5 = tpu.matmul %1, %4, %cst {dimension_numbers = #tpu.dot_dimension_numbers<[1], [0], [0], [1], [0, 0, 1, 1], [], []>} : vector<8x32xbf16>, vector<32x400xbf16>, vector<8x400xf32> -> vector<8x400xf32>
    %c0_5 = arith.constant 0 : index
    %c0_6 = arith.constant 0 : index
    %6 = vector.load %arg4[%c0_5, %c0_6] : memref<1x400xf32, #tpu.memory_space<vmem>>, vector<1x400xf32>
    %7 = vector.broadcast %6 : vector<1x400xf32> to vector<8x400xf32>
    %8 = arith.addf %5, %7 : vector<8x400xf32>
    %cst_7 = arith.constant 0.000000e+00 : f32
    %9 = vector.broadcast %cst_7 : f32 to vector<8x400xf32>
    %10 = arith.maximumf %8, %9 : vector<8x400xf32>
    %11 = arith.truncf %10 : vector<8x400xf32> to vector<8x400xbf16>
    %c0_8 = arith.constant 0 : index
    %c0_9 = arith.constant 0 : index
    %12 = vector.load %arg5[%c0_8, %c0_9] : memref<400x300xbf16, #tpu.memory_space<vmem>>, vector<400x300xbf16>
    %cst_10 = arith.constant dense<0.000000e+00> : vector<8x300xf32>
    %13 = tpu.matmul %11, %12, %cst_10 {dimension_numbers = #tpu.dot_dimension_numbers<[1], [0], [0], [1], [0, 0, 1, 1], [], []>} : vector<8x400xbf16>, vector<400x300xbf16>, vector<8x300xf32> -> vector<8x300xf32>
    %c0_11 = arith.constant 0 : index
    %c0_12 = arith.constant 0 : index
    %14 = vector.load %arg6[%c0_11, %c0_12] : memref<8x300xbf16, #tpu.memory_space<vmem>>, vector<8x300xbf16>
    %cst_13 = arith.constant dense<0.000000e+00> : vector<8x300xf32>
    %15 = tpu.matmul %3, %14, %cst_13 {dimension_numbers = #tpu.dot_dimension_numbers<[1], [0], [0], [1], [0, 0, 1, 1], [], []>} : vector<8x8xbf16>, vector<8x300xbf16>, vector<8x300xf32> -> vector<8x300xf32>
    %16 = arith.addf %13, %15 : vector<8x300xf32>
    %c0_14 = arith.constant 0 : index
    %c0_15 = arith.constant 0 : index
    %17 = vector.load %arg7[%c0_14, %c0_15] : memref<1x300xf32, #tpu.memory_space<vmem>>, vector<1x300xf32>
    %18 = vector.broadcast %17 : vector<1x300xf32> to vector<8x300xf32>
    %19 = arith.addf %16, %18 : vector<8x300xf32>
    %cst_16 = arith.constant 0.000000e+00 : f32
    %20 = vector.broadcast %cst_16 : f32 to vector<8x300xf32>
    %21 = arith.maximumf %19, %20 : vector<8x300xf32>
    %c0_17 = arith.constant 0 : index
    %c0_18 = arith.constant 0 : index
    %22 = vector.load %arg8[%c0_17, %c0_18] : memref<1x300xf32, #tpu.memory_space<vmem>>, vector<1x300xf32>
    %23 = vector.broadcast %22 : vector<1x300xf32> to vector<8x300xf32>
    %24 = arith.mulf %21, %23 : vector<8x300xf32>
    %cst_19 = arith.constant dense<0.000000e+00> : vector<8xf32>
    %25 = vector.multi_reduction <add>, %24, %cst_19 [1] : vector<8x300xf32> to vector<8xf32>
    %26 = vector.shape_cast %25 : vector<8xf32> to vector<8x1xf32>
    %c0_20 = arith.constant 0 : index
    %c0_21 = arith.constant 0 : index
    %27 = vector.load %arg9[%c0_20, %c0_21] : memref<1x1xf32, #tpu.memory_space<vmem>>, vector<1x1xf32>
    %28 = vector.broadcast %27 : vector<1x1xf32> to vector<8x1xf32>
    %29 = arith.addf %26, %28 : vector<8x1xf32>
    %c0_22 = arith.constant 0 : index
    %c0_23 = arith.constant 0 : index
    %30 = vector.load %arg10[%c0_22, %c0_23] : memref<8x1xf32, #tpu.memory_space<vmem>>, vector<8x1xf32>
    tpu.vector_store %arg10[%c0_22, %c0_23], %29 {strides = array<i32>} : memref<8x1xf32, #tpu.memory_space<vmem>>, vector<8x1xf32>,
    return
  }
  func.func @transform_0(%arg0: i32) -> (i32, i32) {
    %c0_i32 = arith.constant 0 : i32
    %c0_i32_0 = arith.constant 0 : i32
    return %arg0, %c0_i32 : i32, i32
  }
  func.func @transform_1(%arg0: i32) -> (i32, i32) {
    %c0_i32 = arith.constant 0 : i32
    %c0_i32_0 = arith.constant 0 : i32
    return %arg0, %c0_i32 : i32, i32
  }
  func.func @transform_2(%arg0: i32) -> (i32, i32) {
    %c0_i32 = arith.constant 0 : i32
    %c0_i32_0 = arith.constant 0 : i32
    %c0_i32_1 = arith.constant 0 : i32
    return %c0_i32, %c0_i32_0 : i32, i32
  }
  func.func @transform_3(%arg0: i32) -> (i32, i32) {
    %c0_i32 = arith.constant 0 : i32
    %c0_i32_0 = arith.constant 0 : i32
    %c0_i32_1 = arith.constant 0 : i32
    return %c0_i32, %c0_i32_0 : i32, i32
  }
  func.func @transform_4(%arg0: i32) -> (i32, i32) {
    %c0_i32 = arith.constant 0 : i32
    %c0_i32_0 = arith.constant 0 : i32
    %c0_i32_1 = arith.constant 0 : i32
    return %c0_i32, %c0_i32_0 : i32, i32
  }
  func.func @transform_5(%arg0: i32) -> (i32, i32) {
    %c0_i32 = arith.constant 0 : i32
    %c0_i32_0 = arith.constant 0 : i32
    %c0_i32_1 = arith.constant 0 : i32
    return %c0_i32, %c0_i32_0 : i32, i32
  }
  func.func @transform_6(%arg0: i32) -> (i32, i32) {
    %c0_i32 = arith.constant 0 : i32
    %c0_i32_0 = arith.constant 0 : i32
    %c0_i32_1 = arith.constant 0 : i32
    return %c0_i32, %c0_i32_0 : i32, i32
  }
  func.func @transform_7(%arg0: i32) -> (i32, i32) {
    %c0_i32 = arith.constant 0 : i32
    %c0_i32_0 = arith.constant 0 : i32
    %c0_i32_1 = arith.constant 0 : i32
    return %c0_i32, %c0_i32_0 : i32, i32
  }
  func.func @transform_8(%arg0: i32) -> (i32, i32) {
    %c0_i32 = arith.constant 0 : i32
    %c0_i32_0 = arith.constant 0 : i32
    %c0_i32_1 = arith.constant 0 : i32
    return %c0_i32, %c0_i32_0 : i32, i32
  }
  func.func @transform_9(%arg0: i32) -> (i32, i32) {
    %c0_i32 = arith.constant 0 : i32
    %c0_i32_0 = arith.constant 0 : i32
    return %arg0, %c0_i32 : i32, i32
  }
}

</mosaic_0001>

<llo_original>
// kernel: tpu_custom_call.1
$region0: #{tpu_custom_call.1}
  #allocation0 [shape = 'u32[]', space=smem, size = 0x4, offset = 0x4, fixed_abs, tag = 'smem constant byte address 0x4 - core index']
  #allocation1 [shape = 'u32[72,128]{1,0:T(1,128)}', space=vmem, size = 0x9000, scoped, tag = 'internal scratch']
  #allocation2 [shape = 'f32[1,1]{1,0:T(1,128)S(1)}', space=vmem, size = 0x200, scoped, tag = 'scoped memory for tpu_custom_call.1']
  %s0 = inlined_call_operand.hbm [shape: f32[8,32], index: 0, kind: input, shape index: {}]
  %s1 = inlined_call_operand.hbm [shape: f32[8,8], index: 1, kind: input, shape index: {}]
  %s2 = inlined_call_operand.hbm [shape: bf16[32,400], index: 2, kind: input, shape index: {}]
  %s3 = inlined_call_operand.vmem [shape: f32[1,400], index: 3, kind: input, shape index: {}]
  %s4 = inlined_call_operand.hbm [shape: bf16[400,300], index: 4, kind: input, shape index: {}]
  %s5 = inlined_call_operand.hbm [shape: bf16[8,300], index: 5, kind: input, shape index: {}]
  %s6 = inlined_call_operand.vmem [shape: f32[1,300], index: 6, kind: input, shape index: {}]
  %s7 = inlined_call_operand.hbm [shape: f32[1,300], index: 7, kind: input, shape index: {}]
  %s8 = inlined_call_operand.<no memory space> [shape: f32[1,1], index: 8, kind: input, shape index: {}]
  %s9 = inlined_call_operand.vmem [shape: f32[8,1], index: 9, kind: output, shape index: {}]
  %s10 = sld [smem:[#allocation0]]
  $region70: #{tpu_custom_call.1} parent=0
    _
  %s12 = ssub.s32 1, %s10
  %s13 = scalar_select 0, %s12, %s10
  %v14 = vstv %s8
  %15 = vst [vmem:[#allocation2] sm:$0x1] %v14
  $region1: #{tpu_custom_call.1} parent=0
    #allocation3 [shape = 'u8[4096]{0}', space=vmem, size = 0x1000, scoped, tag = 'input window, operand 0, single buffered']
    #allocation4 [shape = 's32[1]{0}', space=sflag, size = 0x4, scoped, tag = 'scoped memory for tpu_custom_call.1']
    #allocation5 [shape = 'u8[4096]{0}', space=vmem, size = 0x1000, scoped, tag = 'input window, operand 1, single buffered']
    #allocation6 [shape = 's32[1]{0}', space=sflag, size = 0x4, scoped, tag = 'scoped memory for tpu_custom_call.1']
    #allocation7 [shape = 'u8[32768]{0}', space=vmem, size = 0x8000, scoped, tag = 'input window, operand 2, single buffered']
    #allocation8 [shape = 'u8[307200]{0}', space=vmem, size = 0x4b000, scoped, tag = 'input window, operand 4, single buffered']
    #allocation9 [shape = 's32[1]{0}', space=sflag, size = 0x4, scoped, tag = 'scoped memory for tpu_custom_call.1']
    #allocation10 [shape = 'u8[6144]{0}', space=vmem, size = 0x1800, scoped, tag = 'input window, operand 5, single buffered']
    #allocation11 [shape = 'u8[1536]{0}', space=vmem, size = 0x800, scoped, tag = 'input window, operand 7, single buffered']
    #allocation12 [shape = 's32[1]{0}', space=sflag, size = 0x4, scoped, tag = 'scoped memory for tpu_custom_call.1']
    %16 = vsyncpa [#allocation4], 0
    %17 = vsyncpa [#allocation6], 0
    %18 = vsyncpa [#allocation9], 0
    %19 = vsyncpa [#allocation12], 0
    // Predicated region
    $region2: #{tpu_custom_call.1} parent=1 // pred_check
      _
    $region3: #{tpu_custom_call.1} parent=1 // pred_check_branch
      %21 = sbr.rel (0) target = $region5
    $region4: #{tpu_custom_call.1} parent=1 // pred_region
      %23 = vsyncadd [#allocation4], 0
      %s25 = sshll.u32 %s0, 4
      %s26 = int_to_ptr.hbm [resolvable:$true] %s25
      %s27 = sshll.u32 [#allocation3], 4
      %s28 = int_to_ptr.vmem [resolvable:$true] %s27
      %30 = dma.hbm_to_vmem [thread:$0]  %s26, 128, %s28, [#allocation4]
    $region5: #{tpu_custom_call.1} parent=1 // pred_fallthru
      _
    // Predicated region
    $region6: #{tpu_custom_call.1} parent=1 // pred_check
      _
    $region7: #{tpu_custom_call.1} parent=1 // pred_check_branch
      %32 = sbr.rel (0) target = $region9
    $region8: #{tpu_custom_call.1} parent=1 // pred_region
      %34 = vsyncadd [#allocation6], 0
      %s36 = sshll.u32 %s1, 4
      %s37 = int_to_ptr.hbm [resolvable:$true] %s36
      %s38 = sshll.u32 [#allocation5], 4
      %s39 = int_to_ptr.vmem [resolvable:$true] %s38
      %41 = dma.hbm_to_vmem [thread:$0]  %s37, 128, %s39, [#allocation6]
    $region9: #{tpu_custom_call.1} parent=1 // pred_fallthru
      _
    // Predicated region
    $region10: #{tpu_custom_call.1} parent=1 // pred_check
      _
    $region11: #{tpu_custom_call.1} parent=1 // pred_check_branch
      %43 = sbr.rel (0) target = $region13
    $region12: #{tpu_custom_call.1} parent=1 // pred_region
      %45 = vsyncadd [#allocation6], 0
      %s46 = sshll.u32 %s2, 4
      %s47 = int_to_ptr.hbm [resolvable:$true] %s46
      %s48 = sshll.u32 [#allocation7], 4
      %s49 = int_to_ptr.vmem [resolvable:$true] %s48
      %54 = dma.hbm_to_vmem [thread:$0]  %s47, 1024, %s49, [#allocation6], 256, 256, 16
    $region13: #{tpu_custom_call.1} parent=1 // pred_fallthru
      _
    // Predicated region
    $region14: #{tpu_custom_call.1} parent=1 // pred_check
      _
    $region15: #{tpu_custom_call.1} parent=1 // pred_check_branch
      %56 = sbr.rel (0) target = $region17
    $region16: #{tpu_custom_call.1} parent=1 // pred_region
      _
    $region17: #{tpu_custom_call.1} parent=1 // pred_fallthru
      _
    // Predicated region
    $region18: #{tpu_custom_call.1} parent=1 // pred_check
      _
    $region19: #{tpu_custom_call.1} parent=1 // pred_check_branch
      %58 = sbr.rel (0) target = $region21
    $region20: #{tpu_custom_call.1} parent=1 // pred_region
      %60 = vsyncadd [#allocation9], 0
      %s61 = sshll.u32 %s4, 4
      %s62 = int_to_ptr.hbm [resolvable:$true] %s61
      %s63 = sshll.u32 [#allocation8], 4
      %s64 = int_to_ptr.vmem [resolvable:$true] %s63
      %69 = dma.hbm_to_vmem [thread:$0]  %s62, 9600, %s64, [#allocation9], 192, 192, 12
    $region21: #{tpu_custom_call.1} parent=1 // pred_fallthru
      _
    // Predicated region
    $region22: #{tpu_custom_call.1} parent=1 // pred_check
      _
    $region23: #{tpu_custom_call.1} parent=1 // pred_check_branch
      %71 = sbr.rel (0) target = $region25
    $region24: #{tpu_custom_call.1} parent=1 // pred_region
      %73 = vsyncadd [#allocation9], 0
      %s75 = sshll.u32 %s5, 4
      %s76 = int_to_ptr.hbm [resolvable:$true] %s75
      %s77 = sshll.u32 [#allocation10], 4
      %s78 = int_to_ptr.vmem [resolvable:$true] %s77
      %80 = dma.hbm_to_vmem [thread:$0]  %s76, 192, %s78, [#allocation9]
    $region25: #{tpu_custom_call.1} parent=1 // pred_fallthru
      _
    // Predicated region
    $region26: #{tpu_custom_call.1} parent=1 // pred_check
      _
    $region27: #{tpu_custom_call.1} parent=1 // pred_check_branch
      %82 = sbr.rel (0) target = $region29
    $region28: #{tpu_custom_call.1} parent=1 // pred_region
      _
    $region29: #{tpu_custom_call.1} parent=1 // pred_fallthru
      _
    // Predicated region
    $region30: #{tpu_custom_call.1} parent=1 // pred_check
      _
    $region31: #{tpu_custom_call.1} parent=1 // pred_check_branch
      %84 = sbr.rel (0) target = $region33
    $region32: #{tpu_custom_call.1} parent=1 // pred_region
      %86 = vsyncadd [#allocation12], 0
      %s88 = sshll.u32 %s7, 4
      %s89 = int_to_ptr.hbm [resolvable:$true] %s88
      %s90 = sshll.u32 [#allocation11], 4
      %s91 = int_to_ptr.vmem [resolvable:$true] %s90
      %93 = dma.hbm_to_vmem [thread:$0]  %s89, 48, %s91, [#allocation12]
    $region33: #{tpu_custom_call.1} parent=1 // pred_fallthru
      _
    // Predicated region
    $region34: #{tpu_custom_call.1} parent=1 // pred_check
      _
    $region35: #{tpu_custom_call.1} parent=1 // pred_check_branch
      %95 = sbr.rel (0) target = $region37
    $region36: #{tpu_custom_call.1} parent=1 // pred_region
      _
    $region37: #{tpu_custom_call.1} parent=1 // pred_fallthru
      _
    // Predicated region
    $region38: #{tpu_custom_call.1} parent=1 // pred_check
      _
    $region39: #{tpu_custom_call.1} parent=1 // pred_check_branch
      %97 = sbr.rel (0) target = $region41
    $region40: #{tpu_custom_call.1} parent=1 // pred_region
      %99 = dma.done [#allocation4], 128
    $region41: #{tpu_custom_call.1} parent=1 // pred_fallthru
      _
    // Predicated region
    $region42: #{tpu_custom_call.1} parent=1 // pred_check
      _
    $region43: #{tpu_custom_call.1} parent=1 // pred_check_branch
      %101 = sbr.rel (0) target = $region45
    $region44: #{tpu_custom_call.1} parent=1 // pred_region
      %103 = dma.done [#allocation6], 128
    $region45: #{tpu_custom_call.1} parent=1 // pred_fallthru
      _
    // Predicated region
    $region46: #{tpu_custom_call.1} parent=1 // pred_check
      _
    $region47: #{tpu_custom_call.1} parent=1 // pred_check_branch
      %105 = sbr.rel (0) target = $region49
    $region48: #{tpu_custom_call.1} parent=1 // pred_region
      %107 = dma.done [#allocation6], 1024
    $region49: #{tpu_custom_call.1} parent=1 // pred_fallthru
      _
    // Predicated region
    $region50: #{tpu_custom_call.1} parent=1 // pred_check
      _
    $region51: #{tpu_custom_call.1} parent=1 // pred_check_branch
      %109 = sbr.rel (0) target = $region53
    $region52: #{tpu_custom_call.1} parent=1 // pred_region
      %111 = dma.done [#allocation9], 9600
    $region53: #{tpu_custom_call.1} parent=1 // pred_fallthru
      _
    // Predicated region
    $region54: #{tpu_custom_call.1} parent=1 // pred_check
      _
    $region55: #{tpu_custom_call.1} parent=1 // pred_check_branch
      %113 = sbr.rel (0) target = $region57
    $region56: #{tpu_custom_call.1} parent=1 // pred_region
      %115 = dma.done [#allocation9], 192
    $region57: #{tpu_custom_call.1} parent=1 // pred_fallthru
      _
    // Predicated region
    $region58: #{tpu_custom_call.1} parent=1 // pred_check
      _
    $region59: #{tpu_custom_call.1} parent=1 // pred_check_branch
      %117 = sbr.rel (0) target = $region61
    $region60: #{tpu_custom_call.1} parent=1 // pred_region
      %119 = dma.done [#allocation12], 48
    $region61: #{tpu_custom_call.1} parent=1 // pred_fallthru
      _
    %v121 = vld [vmem:[#allocation3] sm:$0xff]
    %v122 = vpack.c.bf16 %v121, %v121
    %v123 = vld [vmem:[#allocation5] sm:$0xff]
    %v124 = vpack.c.bf16 %v123, %v123
    %v125 = vld [vmem:[#allocation7] sm:$0xff]
    %v126 = vld [vmem:[#allocation7 + $0x8] sm:$0xff]
    %v127 = vld [vmem:[#allocation7 + $0x10] sm:$0xff]
    %v128 = vld [vmem:[#allocation7 + $0x18] sm:$0xff]
    %v129 = vld [vmem:[#allocation7 + $0x20] sm:$0xff]
    %v130 = vld [vmem:[#allocation7 + $0x28] sm:$0xff]
    %v131 = vld [vmem:[#allocation7 + $0x30] sm:$0xff]
    %v132 = vld [vmem:[#allocation7 + $0x38] sm:$0xff]
    %v133 = vld [vmem:[%s3] sm:$0xf]
    %v135 = vperm.slane %v133, 0
    %v136 = vperm.slane %v133, 1
    %v137 = vperm.slane %v133, 2
    %v138 = vperm.slane %v133, 3
    %v151 = vunpack.c.l.b16 %v125
    %v152 = vunpack.c.h.b16 %v125
    %v153 = vunpack.c.l.b16 %v126
    %v154 = vunpack.c.h.b16 %v126
    %v155 = vunpack.c.l.b16 %v127
    %v156 = vunpack.c.h.b16 %v127
    %v157 = vunpack.c.l.b16 %v128
    %v158 = vunpack.c.h.b16 %v128
    %v159 = vunpack.c.l.b16 %v129
    %v160 = vunpack.c.h.b16 %v129
    %v161 = vunpack.c.l.b16 %v130
    %v162 = vunpack.c.h.b16 %v130
    %v163 = vunpack.c.l.b16 %v131
    %v164 = vunpack.c.h.b16 %v131
    %v165 = vunpack.c.l.b16 %v132
    %v166 = vunpack.c.h.b16 %v132
    %v167 = vpack.c.b16 %v155, %v151
    %v168 = vpack.c.b16 %v156, %v152
    %v169 = vpack.c.b16 %v157, %v153
    %v170 = vpack.c.b16 %v158, %v154
    %v171 = vpack.c.b16 %v163, %v159
    %v172 = vpack.c.b16 %v164, %v160
    %v173 = vpack.c.b16 %v165, %v161
    %v174 = vpack.c.b16 %v166, %v162
    %vm183 = vcmask 261120
    %v185 = vsel %vm183, %v122, 0
    %187 = vmatpush.bf16.msra.mxu0 0
    %188 = vmatpush.bf16.msra.mxu0 0
    %189 = vmatpush.bf16.msra.mxu0 0
    %190 = vmatpush.bf16.msra.mxu0 0
    %191 = vmatpush.bf16.msra.mxu0 0
    %192 = vmatpush.bf16.msra.mxu0 0
    %193 = vmatpush.bf16.msra.mxu0 %v171
    %194 = vmatpush.bf16.msra.mxu0 %v167
    %195 = vmatmul.bf16.gmra.mxu0 %v185
    %v196 = vpop.f32.mrf.mxu0
    %v197 = vadd.f32 %v135, %v196
    %v198 = vpop.f32.mrf.mxu0
    %199 = vdwg.mxu0
    %200 = vmatpush.bf16.msra.mxu0 0
    %201 = vmatpush.bf16.msra.mxu0 0
    %202 = vmatpush.bf16.msra.mxu0 0
    %203 = vmatpush.bf16.msra.mxu0 0
    %204 = vmatpush.bf16.msra.mxu0 0
    %205 = vmatpush.bf16.msra.mxu0 0
    %206 = vmatpush.bf16.msra.mxu0 %v172
    %207 = vmatpush.bf16.msra.mxu0 %v168
    %208 = vmatmul.bf16.gmra.mxu0 %v185
    %v209 = vpop.f32.mrf.mxu0
    %v210 = vadd.f32 %v136, %v209
    %v211 = vpop.f32.mrf.mxu0
    %212 = vdwg.mxu0
    %213 = vmatpush.bf16.msra.mxu0 0
    %214 = vmatpush.bf16.msra.mxu0 0
    %215 = vmatpush.bf16.msra.mxu0 0
    %216 = vmatpush.bf16.msra.mxu0 0
    %217 = vmatpush.bf16.msra.mxu0 0
    %218 = vmatpush.bf16.msra.mxu0 0
    %219 = vmatpush.bf16.msra.mxu0 %v173
    %220 = vmatpush.bf16.msra.mxu0 %v169
    %221 = vmatmul.bf16.gmra.mxu0 %v185
    %v222 = vpop.f32.mrf.mxu0
    %v223 = vadd.f32 %v137, %v222
    %v224 = vpop.f32.mrf.mxu0
    %225 = vdwg.mxu0
    %226 = vmatpush.bf16.msra.mxu0 0
    %227 = vmatpush.bf16.msra.mxu0 0
    %228 = vmatpush.bf16.msra.mxu0 0
    %229 = vmatpush.bf16.msra.mxu0 0
    %230 = vmatpush.bf16.msra.mxu0 0
    %231 = vmatpush.bf16.msra.mxu0 0
    %232 = vmatpush.bf16.msra.mxu0 %v174
    %233 = vmatpush.bf16.msra.mxu0 %v170
    %234 = vmatmul.bf16.gmra.mxu0 %v185
    %v235 = vpop.f32.mrf.mxu0
    %v236 = vadd.f32 %v138, %v235
    %v237 = vpop.f32.mrf.mxu0
    %238 = vdwg.mxu0
    %v239 = vmax.f32 %v197, 0.0
    %v240 = vmax.f32 %v210, 0.0
    %v241 = vmax.f32 %v223, 0.0
    %v242 = vmax.f32 %v236, 0.0
    %v243 = vpack.c.bf16 %v239, %v239
    %v244 = vpack.c.bf16 %v240, %v240
    %v245 = vpack.c.bf16 %v241, %v241
    %v246 = vpack.c.bf16 %v242, %v242
    %v247 = vld [vmem:[#allocation8] sm:$0xff]
    %v248 = vld [vmem:[#allocation8 + $0x8] sm:$0xf]
    %v249 = vld [vmem:[#allocation8 + $0xc] sm:$0xff]
    %v250 = vld [vmem:[#allocation8 + $0x14] sm:$0xf]
    %v251 = vld [vmem:[#allocation8 + $0x18] sm:$0xff]
    %v252 = vld [vmem:[#allocation8 + $0x20] sm:$0xf]
    %v253 = vld [vmem:[#allocation8 + $0x24] sm:$0xff]
    %v254 = vld [vmem:[#allocation8 + $0x2c] sm:$0xf]
    %v255 = vld [vmem:[#allocation8 + $0x30] sm:$0xff]
    %v256 = vld [vmem:[#allocation8 + $0x38] sm:$0xf]
    %v257 = vld [vmem:[#allocation8 + $0x3c] sm:$0xff]
    %v258 = vld [vmem:[#allocation8 + $0x44] sm:$0xf]
    %v259 = vld [vmem:[#allocation8 + $0x48] sm:$0xff]
    %v260 = vld [vmem:[#allocation8 + $0x50] sm:$0xf]
    %v261 = vld [vmem:[#allocation8 + $0x54] sm:$0xff]
    %v262 = vld [vmem:[#allocation8 + $0x5c] sm:$0xf]
    %v263 = vld [vmem:[#allocation8 + $0x60] sm:$0xff]
    %v264 = vld [vmem:[#allocation8 + $0x68] sm:$0xf]
    %v265 = vld [vmem:[#allocation8 + $0x6c] sm:$0xff]
    %v266 = vld [vmem:[#allocation8 + $0x74] sm:$0xf]
    %v267 = vld [vmem:[#allocation8 + $0x78] sm:$0xff]
    %v268 = vld [vmem:[#allocation8 + $0x80] sm:$0xf]
    %v269 = vld [vmem:[#allocation8 + $0x84] sm:$0xff]
    %v270 = vld [vmem:[#allocation8 + $0x8c] sm:$0xf]
    %v271 = vld [vmem:[#allocation8 + $0x90] sm:$0xff]
    %v272 = vld [vmem:[#allocation8 + $0x98] sm:$0xf]
    %v273 = vld [vmem:[#allocation8 + $0x9c] sm:$0xff]
    %v274 = vld [vmem:[#allocation8 + $0xa4] sm:$0xf]
    %v275 = vld [vmem:[#allocation8 + $0xa8] sm:$0xff]
    %v276 = vld [vmem:[#allocation8 + $0xb0] sm:$0xf]
    %v277 = vld [vmem:[#allocation8 + $0xb4] sm:$0xff]
    %v278 = vld [vmem:[#allocation8 + $0xbc] sm:$0xf]
    %v279 = vld [vmem:[#allocation8 + $0xc0] sm:$0xff]
    %v280 = vld [vmem:[#allocation8 + $0xc8] sm:$0xf]
    %v281 = vld [vmem:[#allocation8 + $0xcc] sm:$0xff]
    %v282 = vld [vmem:[#allocation8 + $0xd4] sm:$0xf]
    %v283 = vld [vmem:[#allocation8 + $0xd8] sm:$0xff]
    %v284 = vld [vmem:[#allocation8 + $0xe0] sm:$0xf]
    %v285 = vld [vmem:[#allocation8 + $0xe4] sm:$0xff]
    %v286 = vld [vmem:[#allocation8 + $0xec] sm:$0xf]
    %v287 = vld [vmem:[#allocation8 + $0xf0] sm:$0xff]
    %v288 = vld [vmem:[#allocation8 + $0xf8] sm:$0xf]
    %v289 = vld [vmem:[#allocation8 + $0xfc] sm:$0xff]
    %v290 = vld [vmem:[#allocation8 + $0x104] sm:$0xf]
    %v291 = vld [vmem:[#allocation8 + $0x108] sm:$0xff]
    %v292 = vld [vmem:[#allocation8 + $0x110] sm:$0xf]
    %v293 = vld [vmem:[#allocation8 + $0x114] sm:$0xff]
    %v294 = vld [vmem:[#allocation8 + $0x11c] sm:$0xf]
    %v295 = vld [vmem:[#allocation8 + $0x120] sm:$0xff]
    %v296 = vld [vmem:[#allocation8 + $0x128] sm:$0xf]
    %v297 = vld [vmem:[#allocation8 + $0x12c] sm:$0xff]
    %v298 = vld [vmem:[#allocation8 + $0x134] sm:$0xf]
    %v299 = vld [vmem:[#allocation8 + $0x138] sm:$0xff]
    %v300 = vld [vmem:[#allocation8 + $0x140] sm:$0xf]
    %v301 = vld [vmem:[#allocation8 + $0x144] sm:$0xff]
    %v302 = vld [vmem:[#allocation8 + $0x14c] sm:$0xf]
    %v303 = vld [vmem:[#allocation8 + $0x150] sm:$0xff]
    %v304 = vld [vmem:[#allocation8 + $0x158] sm:$0xf]
    %v305 = vld [vmem:[#allocation8 + $0x15c] sm:$0xff]
    %v306 = vld [vmem:[#allocation8 + $0x164] sm:$0xf]
    %v307 = vld [vmem:[#allocation8 + $0x168] sm:$0xff]
    %v308 = vld [vmem:[#allocation8 + $0x170] sm:$0xf]
    %v309 = vld [vmem:[#allocation8 + $0x174] sm:$0xff]
    %v310 = vld [vmem:[#allocation8 + $0x17c] sm:$0xf]
    %v311 = vld [vmem:[#allocation8 + $0x180] sm:$0xff]
    %v312 = vld [vmem:[#allocation8 + $0x188] sm:$0xf]
    %v313 = vld [vmem:[#allocation8 + $0x18c] sm:$0xff]
    %v314 = vld [vmem:[#allocation8 + $0x194] sm:$0xf]
    %v315 = vld [vmem:[#allocation8 + $0x198] sm:$0xff]
    %v316 = vld [vmem:[#allocation8 + $0x1a0] sm:$0xf]
    %v317 = vld [vmem:[#allocation8 + $0x1a4] sm:$0xff]
    %v318 = vld [vmem:[#allocation8 + $0x1ac] sm:$0xf]
    %v319 = vld [vmem:[#allocation8 + $0x1b0] sm:$0xff]
    %v320 = vld [vmem:[#allocation8 + $0x1b8] sm:$0xf]
    %v321 = vld [vmem:[#allocation8 + $0x1bc] sm:$0xff]
    %v322 = vld [vmem:[#allocation8 + $0x1c4] sm:$0xf]
    %v323 = vld [vmem:[#allocation8 + $0x1c8] sm:$0xff]
    %v324 = vld [vmem:[#allocation8 + $0x1d0] sm:$0xf]
    %v325 = vld [vmem:[#allocation8 + $0x1d4] sm:$0xff]
    %v326 = vld [vmem:[#allocation8 + $0x1dc] sm:$0xf]
    %v327 = vld [vmem:[#allocation8 + $0x1e0] sm:$0xff]
    %v328 = vld [vmem:[#allocation8 + $0x1e8] sm:$0xf]
    %v329 = vld [vmem:[#allocation8 + $0x1ec] sm:$0xff]
    %v330 = vld [vmem:[#allocation8 + $0x1f4] sm:$0xf]
    %v331 = vld [vmem:[#allocation8 + $0x1f8] sm:$0xff]
    %v332 = vld [vmem:[#allocation8 + $0x200] sm:$0xf]
    %v333 = vld [vmem:[#allocation8 + $0x204] sm:$0xff]
    %v334 = vld [vmem:[#allocation8 + $0x20c] sm:$0xf]
    %v335 = vld [vmem:[#allocation8 + $0x210] sm:$0xff]
    %v336 = vld [vmem:[#allocation8 + $0x218] sm:$0xf]
    %v337 = vld [vmem:[#allocation8 + $0x21c] sm:$0xff]
    %v338 = vld [vmem:[#allocation8 + $0x224] sm:$0xf]
    %v339 = vld [vmem:[#allocation8 + $0x228] sm:$0xff]
    %v340 = vld [vmem:[#allocation8 + $0x230] sm:$0xf]
    %v341 = vld [vmem:[#allocation8 + $0x234] sm:$0xff]
    %v342 = vld [vmem:[#allocation8 + $0x23c] sm:$0xf]
    %v343 = vld [vmem:[#allocation8 + $0x240] sm:$0xff]
    %v344 = vld [vmem:[#allocation8 + $0x248] sm:$0xf]
    %v345 = vld [vmem:[#allocation8 + $0x24c] sm:$0xff]
    %v346 = vld [vmem:[#allocation8 + $0x254] sm:$0xf]
    %v347 = vld [vmem:[#allocation10] sm:$0xff]
    %v348 = vld [vmem:[#allocation10 + $0x8] sm:$0xf]
    %v351 = vunpack.c.l.b16 %v347
    %v352 = vunpack.c.h.b16 %v347
    %v353 = vunpack.c.l.b16 %v348
    %v354 = vpack.c.b16 %v351, %v351
    %v355 = vpack.c.b16 %v352, %v352
    %v356 = vpack.c.b16 %v353, %v353
    %vm357 = vcmask 64512
    %v359 = vsel %vm357, %v124, 0
    %vm361 = vcmask 1043456
    %v363 = vsel %vm361, %v354, 0
    %v366 = vsel %vm361, %v355, 0
    %v369 = vsel %vm361, %v356, 0
    %371 = vmatpush.bf16.msra.mxu0 0
    %372 = vmatpush.bf16.msra.mxu0 0
    %373 = vmatpush.bf16.msra.mxu0 0
    %374 = vmatpush.bf16.msra.mxu0 0
    %375 = vmatpush.bf16.msra.mxu0 0
    %376 = vmatpush.bf16.msra.mxu0 0
    %377 = vmatpush.bf16.msra.mxu0 0
    %378 = vmatpush.bf16.msra.mxu0 %v363
    %379 = vmatmul.bf16.gmra.mxu0 %v359
    %v380 = vpop.f32.mrf.mxu0
    %v381 = vadd.f32 0.0, %v380
    %v382 = vpop.f32.mrf.mxu0
    %383 = vdwg.mxu0
    %384 = vmatpush.bf16.msra.mxu0 0
    %385 = vmatpush.bf16.msra.mxu0 0
    %386 = vmatpush.bf16.msra.mxu0 0
    %387 = vmatpush.bf16.msra.mxu0 0
    %388 = vmatpush.bf16.msra.mxu0 0
    %389 = vmatpush.bf16.msra.mxu0 0
    %390 = vmatpush.bf16.msra.mxu0 0
    %391 = vmatpush.bf16.msra.mxu0 %v366
    %392 = vmatmul.bf16.gmra.mxu0 %v359
    %v393 = vpop.f32.mrf.mxu0
    %v394 = vadd.f32 0.0, %v393
    %v395 = vpop.f32.mrf.mxu0
    %396 = vdwg.mxu0
    %397 = vmatpush.bf16.msra.mxu0 0
    %398 = vmatpush.bf16.msra.mxu0 0
    %399 = vmatpush.bf16.msra.mxu0 0
    %400 = vmatpush.bf16.msra.mxu0 0
    %401 = vmatpush.bf16.msra.mxu0 0
    %402 = vmatpush.bf16.msra.mxu0 0
    %403 = vmatpush.bf16.msra.mxu0 0
    %404 = vmatpush.bf16.msra.mxu0 %v369
    %405 = vmatmul.bf16.gmra.mxu0 %v359
    %v406 = vpop.f32.mrf.mxu0
    %v407 = vadd.f32 0.0, %v406
    %v408 = vpop.f32.mrf.mxu0
    %409 = vdwg.mxu0
    %v510 = vunpack.c.l.b16 %v247
    %v511 = vunpack.c.h.b16 %v247
    %v512 = vunpack.c.l.b16 %v248
    %v513 = vunpack.c.l.b16 %v249
    %v514 = vunpack.c.h.b16 %v249
    %v515 = vunpack.c.l.b16 %v250
    %v516 = vunpack.c.l.b16 %v251
    %v517 = vunpack.c.h.b16 %v251
    %v518 = vunpack.c.l.b16 %v252
    %v519 = vunpack.c.l.b16 %v253
    %v520 = vunpack.c.h.b16 %v253
    %v521 = vunpack.c.l.b16 %v254
    %v522 = vunpack.c.l.b16 %v255
    %v523 = vunpack.c.h.b16 %v255
    %v524 = vunpack.c.l.b16 %v256
    %v525 = vunpack.c.l.b16 %v257
    %v526 = vunpack.c.h.b16 %v257
    %v527 = vunpack.c.l.b16 %v258
    %v528 = vunpack.c.l.b16 %v259
    %v529 = vunpack.c.h.b16 %v259
    %v530 = vunpack.c.l.b16 %v260
    %v531 = vunpack.c.l.b16 %v261
    %v532 = vunpack.c.h.b16 %v261
    %v533 = vunpack.c.l.b16 %v262
    %v534 = vunpack.c.l.b16 %v263
    %v535 = vunpack.c.h.b16 %v263
    %v536 = vunpack.c.l.b16 %v264
    %v537 = vunpack.c.l.b16 %v265
    %v538 = vunpack.c.h.b16 %v265
    %v539 = vunpack.c.l.b16 %v266
    %v540 = vunpack.c.l.b16 %v267
    %v541 = vunpack.c.h.b16 %v267
    %v542 = vunpack.c.l.b16 %v268
    %v543 = vunpack.c.l.b16 %v269
    %v544 = vunpack.c.h.b16 %v269
    %v545 = vunpack.c.l.b16 %v270
    %v546 = vunpack.c.l.b16 %v271
    %v547 = vunpack.c.h.b16 %v271
    %v548 = vunpack.c.l.b16 %v272
    %v549 = vunpack.c.l.b16 %v273
    %v550 = vunpack.c.h.b16 %v273
    %v551 = vunpack.c.l.b16 %v274
    %v552 = vunpack.c.l.b16 %v275
    %v553 = vunpack.c.h.b16 %v275
    %v554 = vunpack.c.l.b16 %v276
    %v555 = vunpack.c.l.b16 %v277
    %v556 = vunpack.c.h.b16 %v277
    %v557 = vunpack.c.l.b16 %v278
    %v558 = vunpack.c.l.b16 %v279
    %v559 = vunpack.c.h.b16 %v279
    %v560 = vunpack.c.l.b16 %v280
    %v561 = vunpack.c.l.b16 %v281
    %v562 = vunpack.c.h.b16 %v281
    %v563 = vunpack.c.l.b16 %v282
    %v564 = vunpack.c.l.b16 %v283
    %v565 = vunpack.c.h.b16 %v283
    %v566 = vunpack.c.l.b16 %v284
    %v567 = vunpack.c.l.b16 %v285
    %v568 = vunpack.c.h.b16 %v285
    %v569 = vunpack.c.l.b16 %v286
    %v570 = vunpack.c.l.b16 %v287
    %v571 = vunpack.c.h.b16 %v287
    %v572 = vunpack.c.l.b16 %v288
    %v573 = vunpack.c.l.b16 %v289
    %v574 = vunpack.c.h.b16 %v289
    %v575 = vunpack.c.l.b16 %v290
    %v576 = vunpack.c.l.b16 %v291
    %v577 = vunpack.c.h.b16 %v291
    %v578 = vunpack.c.l.b16 %v292
    %v579 = vunpack.c.l.b16 %v293
    %v580 = vunpack.c.h.b16 %v293
    %v581 = vunpack.c.l.b16 %v294
    %v582 = vunpack.c.l.b16 %v295
    %v583 = vunpack.c.h.b16 %v295
    %v584 = vunpack.c.l.b16 %v296
    %v585 = vunpack.c.l.b16 %v297
    %v586 = vunpack.c.h.b16 %v297
    %v587 = vunpack.c.l.b16 %v298
    %v588 = vunpack.c.l.b16 %v299
    %v589 = vunpack.c.h.b16 %v299
    %v590 = vunpack.c.l.b16 %v300
    %v591 = vunpack.c.l.b16 %v301
    %v592 = vunpack.c.h.b16 %v301
    %v593 = vunpack.c.l.b16 %v302
    %v594 = vunpack.c.l.b16 %v303
    %v595 = vunpack.c.h.b16 %v303
    %v596 = vunpack.c.l.b16 %v304
    %v597 = vunpack.c.l.b16 %v305
    %v598 = vunpack.c.h.b16 %v305
    %v599 = vunpack.c.l.b16 %v306
    %v600 = vunpack.c.l.b16 %v307
    %v601 = vunpack.c.h.b16 %v307
    %v602 = vunpack.c.l.b16 %v308
    %v603 = vunpack.c.l.b16 %v309
    %v604 = vunpack.c.h.b16 %v309
    %v605 = vunpack.c.l.b16 %v310
    %v606 = vunpack.c.l.b16 %v311
    %v607 = vunpack.c.h.b16 %v311
    %v608 = vunpack.c.l.b16 %v312
    %v609 = vunpack.c.l.b16 %v313
    %v610 = vunpack.c.h.b16 %v313
    %v611 = vunpack.c.l.b16 %v314
    %v612 = vunpack.c.l.b16 %v315
    %v613 = vunpack.c.h.b16 %v315
    %v614 = vunpack.c.l.b16 %v316
    %v615 = vunpack.c.l.b16 %v317
    %v616 = vunpack.c.h.b16 %v317
    %v617 = vunpack.c.l.b16 %v318
    %v618 = vunpack.c.l.b16 %v319
    %v619 = vunpack.c.h.b16 %v319
    %v620 = vunpack.c.l.b16 %v320
    %v621 = vunpack.c.l.b16 %v321
    %v622 = vunpack.c.h.b16 %v321
    %v623 = vunpack.c.l.b16 %v322
    %v624 = vunpack.c.l.b16 %v323
    %v625 = vunpack.c.h.b16 %v323
    %v626 = vunpack.c.l.b16 %v324
    %v627 = vunpack.c.l.b16 %v325
    %v628 = vunpack.c.h.b16 %v325
    %v629 = vunpack.c.l.b16 %v326
    %v630 = vunpack.c.l.b16 %v327
    %v631 = vunpack.c.h.b16 %v327
    %v632 = vunpack.c.l.b16 %v328
    %v633 = vunpack.c.l.b16 %v329
    %v634 = vunpack.c.h.b16 %v329
    %v635 = vunpack.c.l.b16 %v330
    %v636 = vunpack.c.l.b16 %v331
    %v637 = vunpack.c.h.b16 %v331
    %v638 = vunpack.c.l.b16 %v332
    %v639 = vunpack.c.l.b16 %v333
    %v640 = vunpack.c.h.b16 %v333
    %v641 = vunpack.c.l.b16 %v334
    %v642 = vunpack.c.l.b16 %v335
    %v643 = vunpack.c.h.b16 %v335
    %v644 = vunpack.c.l.b16 %v336
    %v645 = vunpack.c.l.b16 %v337
    %v646 = vunpack.c.h.b16 %v337
    %v647 = vunpack.c.l.b16 %v338
    %v648 = vunpack.c.l.b16 %v339
    %v649 = vunpack.c.h.b16 %v339
    %v650 = vunpack.c.l.b16 %v340
    %v651 = vunpack.c.l.b16 %v341
    %v652 = vunpack.c.h.b16 %v341
    %v653 = vunpack.c.l.b16 %v342
    %v654 = vunpack.c.l.b16 %v343
    %v655 = vunpack.c.h.b16 %v343
    %v656 = vunpack.c.l.b16 %v344
    %v657 = vunpack.c.l.b16 %v345
    %v658 = vunpack.c.h.b16 %v345
    %v659 = vunpack.c.l.b16 %v346
    %v660 = vpack.c.b16 %v513, %v510
    %v661 = vpack.c.b16 %v514, %v511
    %v662 = vpack.c.b16 %v515, %v512
    %v663 = vpack.c.b16 %v519, %v516
    %v664 = vpack.c.b16 %v520, %v517
    %v665 = vpack.c.b16 %v521, %v518
    %v666 = vpack.c.b16 %v525, %v522
    %v667 = vpack.c.b16 %v526, %v523
    %v668 = vpack.c.b16 %v527, %v524
    %v669 = vpack.c.b16 %v531, %v528
    %v670 = vpack.c.b16 %v532, %v529
    %v671 = vpack.c.b16 %v533, %v530
    %v672 = vpack.c.b16 %v537, %v534
    %v673 = vpack.c.b16 %v538, %v535
    %v674 = vpack.c.b16 %v539, %v536
    %v675 = vpack.c.b16 %v543, %v540
    %v676 = vpack.c.b16 %v544, %v541
    %v677 = vpack.c.b16 %v545, %v542
    %v678 = vpack.c.b16 %v549, %v546
    %v679 = vpack.c.b16 %v550, %v547
    %v680 = vpack.c.b16 %v551, %v548
    %v681 = vpack.c.b16 %v555, %v552
    %v682 = vpack.c.b16 %v556, %v553
    %v683 = vpack.c.b16 %v557, %v554
    %v684 = vpack.c.b16 %v561, %v558
    %v685 = vpack.c.b16 %v562, %v559
    %v686 = vpack.c.b16 %v563, %v560
    %v687 = vpack.c.b16 %v567, %v564
    %v688 = vpack.c.b16 %v568, %v565
    %v689 = vpack.c.b16 %v569, %v566
    %v690 = vpack.c.b16 %v573, %v570
    %v691 = vpack.c.b16 %v574, %v571
    %v692 = vpack.c.b16 %v575, %v572
    %v693 = vpack.c.b16 %v579, %v576
    %v694 = vpack.c.b16 %v580, %v577
    %v695 = vpack.c.b16 %v581, %v578
    %v696 = vpack.c.b16 %v585, %v582
    %v697 = vpack.c.b16 %v586, %v583
    %v698 = vpack.c.b16 %v587, %v584
    %v699 = vpack.c.b16 %v591, %v588
    %v700 = vpack.c.b16 %v592, %v589
    %v701 = vpack.c.b16 %v593, %v590
    %v702 = vpack.c.b16 %v597, %v594
    %v703 = vpack.c.b16 %v598, %v595
    %v704 = vpack.c.b16 %v599, %v596
    %v705 = vpack.c.b16 %v603, %v600
    %v706 = vpack.c.b16 %v604, %v601
    %v707 = vpack.c.b16 %v605, %v602
    %v708 = vpack.c.b16 %v609, %v606
    %v709 = vpack.c.b16 %v610, %v607
    %v710 = vpack.c.b16 %v611, %v608
    %v711 = vpack.c.b16 %v615, %v612
    %v712 = vpack.c.b16 %v616, %v613
    %v713 = vpack.c.b16 %v617, %v614
    %v714 = vpack.c.b16 %v621, %v618
    %v715 = vpack.c.b16 %v622, %v619
    %v716 = vpack.c.b16 %v623, %v620
    %v717 = vpack.c.b16 %v627, %v624
    %v718 = vpack.c.b16 %v628, %v625
    %v719 = vpack.c.b16 %v629, %v626
    %v720 = vpack.c.b16 %v633, %v630
    %v721 = vpack.c.b16 %v634, %v631
    %v722 = vpack.c.b16 %v635, %v632
    %v723 = vpack.c.b16 %v639, %v636
    %v724 = vpack.c.b16 %v640, %v637
    %v725 = vpack.c.b16 %v641, %v638
    %v726 = vpack.c.b16 %v645, %v642
    %v727 = vpack.c.b16 %v646, %v643
    %v728 = vpack.c.b16 %v647, %v644
    %v729 = vpack.c.b16 %v651, %v648
    %v730 = vpack.c.b16 %v652, %v649
    %v731 = vpack.c.b16 %v653, %v650
    %v732 = vpack.c.b16 %v657, %v654
    %v733 = vpack.c.b16 %v658, %v655
    %v734 = vpack.c.b16 %v659, %v656
    %vm810 = vcmask 130048
    %v812 = vsel %vm810, %v246, 0
    %814 = vmatpush.bf16.msra.mxu0 %v681
    %815 = vmatpush.bf16.msra.mxu0 %v678
    %816 = vmatpush.bf16.msra.mxu0 %v675
    %817 = vmatpush.bf16.msra.mxu0 %v672
    %818 = vmatpush.bf16.msra.mxu0 %v669
    %819 = vmatpush.bf16.msra.mxu0 %v666
    %820 = vmatpush.bf16.msra.mxu0 %v663
    %821 = vmatpush.bf16.msra.mxu0 %v660
    %822 = vmatmul.bf16.gmra.mxu0 %v243
    %v823 = vpop.f32.mrf.mxu0
    %v824 = vadd.f32 %v381, %v823
    %v825 = vpop.f32.mrf.mxu0
    %826 = vdwg.mxu0
    %827 = vmatpush.bf16.msra.mxu0 %v705
    %828 = vmatpush.bf16.msra.mxu0 %v702
    %829 = vmatpush.bf16.msra.mxu0 %v699
    %830 = vmatpush.bf16.msra.mxu0 %v696
    %831 = vmatpush.bf16.msra.mxu0 %v693
    %832 = vmatpush.bf16.msra.mxu0 %v690
    %833 = vmatpush.bf16.msra.mxu0 %v687
    %834 = vmatpush.bf16.msra.mxu0 %v684
    %835 = vmatmul.bf16.gmra.mxu0 %v244
    %v836 = vpop.f32.mrf.mxu0
    %v837 = vadd.f32 %v824, %v836
    %v838 = vpop.f32.mrf.mxu0
    %839 = vdwg.mxu0
    %840 = vmatpush.bf16.msra.mxu0 %v729
    %841 = vmatpush.bf16.msra.mxu0 %v726
    %842 = vmatpush.bf16.msra.mxu0 %v723
    %843 = vmatpush.bf16.msra.mxu0 %v720
    %844 = vmatpush.bf16.msra.mxu0 %v717
    %845 = vmatpush.bf16.msra.mxu0 %v714
    %846 = vmatpush.bf16.msra.mxu0 %v711
    %847 = vmatpush.bf16.msra.mxu0 %v708
    %848 = vmatmul.bf16.gmra.mxu0 %v245
    %v849 = vpop.f32.mrf.mxu0
    %v850 = vadd.f32 %v837, %v849
    %v851 = vpop.f32.mrf.mxu0
    %852 = vdwg.mxu0
    %853 = vmatpush.bf16.msra.mxu0 0
    %854 = vmatpush.bf16.msra.mxu0 0
    %855 = vmatpush.bf16.msra.mxu0 0
    %856 = vmatpush.bf16.msra.mxu0 0
    %857 = vmatpush.bf16.msra.mxu0 0
    %858 = vmatpush.bf16.msra.mxu0 0
    %859 = vmatpush.bf16.msra.mxu0 0
    %860 = vmatpush.bf16.msra.mxu0 %v732
    %861 = vmatmul.bf16.gmra.mxu0 %v812
    %v862 = vpop.f32.mrf.mxu0
    %v863 = vadd.f32 %v850, %v862
    %v864 = vpop.f32.mrf.mxu0
    %865 = vdwg.mxu0
    %866 = vmatpush.bf16.msra.mxu0 %v682
    %867 = vmatpush.bf16.msra.mxu0 %v679
    %868 = vmatpush.bf16.msra.mxu0 %v676
    %869 = vmatpush.bf16.msra.mxu0 %v673
    %870 = vmatpush.bf16.msra.mxu0 %v670
    %871 = vmatpush.bf16.msra.mxu0 %v667
    %872 = vmatpush.bf16.msra.mxu0 %v664
    %873 = vmatpush.bf16.msra.mxu0 %v661
    %874 = vmatmul.bf16.gmra.mxu0 %v243
    %v875 = vpop.f32.mrf.mxu0
    %v876 = vadd.f32 %v394, %v875
    %v877 = vpop.f32.mrf.mxu0
    %878 = vdwg.mxu0
    %879 = vmatpush.bf16.msra.mxu0 %v706
    %880 = vmatpush.bf16.msra.mxu0 %v703
    %881 = vmatpush.bf16.msra.mxu0 %v700
    %882 = vmatpush.bf16.msra.mxu0 %v697
    %883 = vmatpush.bf16.msra.mxu0 %v694
    %884 = vmatpush.bf16.msra.mxu0 %v691
    %885 = vmatpush.bf16.msra.mxu0 %v688
    %886 = vmatpush.bf16.msra.mxu0 %v685
    %887 = vmatmul.bf16.gmra.mxu0 %v244
    %v888 = vpop.f32.mrf.mxu0
    %v889 = vadd.f32 %v876, %v888
    %v890 = vpop.f32.mrf.mxu0
    %891 = vdwg.mxu0
    %892 = vmatpush.bf16.msra.mxu0 %v730
    %893 = vmatpush.bf16.msra.mxu0 %v727
    %894 = vmatpush.bf16.msra.mxu0 %v724
    %895 = vmatpush.bf16.msra.mxu0 %v721
    %896 = vmatpush.bf16.msra.mxu0 %v718
    %897 = vmatpush.bf16.msra.mxu0 %v715
    %898 = vmatpush.bf16.msra.mxu0 %v712
    %899 = vmatpush.bf16.msra.mxu0 %v709
    %900 = vmatmul.bf16.gmra.mxu0 %v245
    %v901 = vpop.f32.mrf.mxu0
    %v902 = vadd.f32 %v889, %v901
    %v903 = vpop.f32.mrf.mxu0
    %904 = vdwg.mxu0
    %905 = vmatpush.bf16.msra.mxu0 0
    %906 = vmatpush.bf16.msra.mxu0 0
    %907 = vmatpush.bf16.msra.mxu0 0
    %908 = vmatpush.bf16.msra.mxu0 0
    %909 = vmatpush.bf16.msra.mxu0 0
    %910 = vmatpush.bf16.msra.mxu0 0
    %911 = vmatpush.bf16.msra.mxu0 0
    %912 = vmatpush.bf16.msra.mxu0 %v733
    %913 = vmatmul.bf16.gmra.mxu0 %v812
    %v914 = vpop.f32.mrf.mxu0
    %v915 = vadd.f32 %v902, %v914
    %v916 = vpop.f32.mrf.mxu0
    %917 = vdwg.mxu0
    %918 = vmatpush.bf16.msra.mxu0 %v683
    %919 = vmatpush.bf16.msra.mxu0 %v680
    %920 = vmatpush.bf16.msra.mxu0 %v677
    %921 = vmatpush.bf16.msra.mxu0 %v674
    %922 = vmatpush.bf16.msra.mxu0 %v671
    %923 = vmatpush.bf16.msra.mxu0 %v668
    %924 = vmatpush.bf16.msra.mxu0 %v665
    %925 = vmatpush.bf16.msra.mxu0 %v662
    %926 = vmatmul.bf16.gmra.mxu0 %v243
    %v927 = vpop.f32.mrf.mxu0
    %v928 = vadd.f32 %v407, %v927
    %v929 = vpop.f32.mrf.mxu0
    %930 = vdwg.mxu0
    %931 = vmatpush.bf16.msra.mxu0 %v707
    %932 = vmatpush.bf16.msra.mxu0 %v704
    %933 = vmatpush.bf16.msra.mxu0 %v701
    %934 = vmatpush.bf16.msra.mxu0 %v698
    %935 = vmatpush.bf16.msra.mxu0 %v695
    %936 = vmatpush.bf16.msra.mxu0 %v692
    %937 = vmatpush.bf16.msra.mxu0 %v689
    %938 = vmatpush.bf16.msra.mxu0 %v686
    %939 = vmatmul.bf16.gmra.mxu0 %v244
    %v940 = vpop.f32.mrf.mxu0
    %v941 = vadd.f32 %v928, %v940
    %v942 = vpop.f32.mrf.mxu0
    %943 = vdwg.mxu0
    %944 = vmatpush.bf16.msra.mxu0 %v731
    %945 = vmatpush.bf16.msra.mxu0 %v728
    %946 = vmatpush.bf16.msra.mxu0 %v725
    %947 = vmatpush.bf16.msra.mxu0 %v722
    %948 = vmatpush.bf16.msra.mxu0 %v719
    %949 = vmatpush.bf16.msra.mxu0 %v716
    %950 = vmatpush.bf16.msra.mxu0 %v713
    %951 = vmatpush.bf16.msra.mxu0 %v710
    %952 = vmatmul.bf16.gmra.mxu0 %v245
    %v953 = vpop.f32.mrf.mxu0
    %v954 = vadd.f32 %v941, %v953
    %v955 = vpop.f32.mrf.mxu0
    %956 = vdwg.mxu0
    %957 = vmatpush.bf16.msra.mxu0 0
    %958 = vmatpush.bf16.msra.mxu0 0
    %959 = vmatpush.bf16.msra.mxu0 0
    %960 = vmatpush.bf16.msra.mxu0 0
    %961 = vmatpush.bf16.msra.mxu0 0
    %962 = vmatpush.bf16.msra.mxu0 0
    %963 = vmatpush.bf16.msra.mxu0 0
    %964 = vmatpush.bf16.msra.mxu0 %v734
    %965 = vmatmul.bf16.gmra.mxu0 %v812
    %v966 = vpop.f32.mrf.mxu0
    %v967 = vadd.f32 %v954, %v966
    %v968 = vpop.f32.mrf.mxu0
    %969 = vdwg.mxu0
    %v970 = vld [vmem:[%s6] sm:$0x7]
    %v972 = vperm.slane %v970, 0
    %v973 = vperm.slane %v970, 1
    %v974 = vperm.slane %v970, 2
    %v978 = vadd.f32 %v863, %v972
    %v979 = vadd.f32 %v915, %v973
    %v980 = vadd.f32 %v967, %v974
    %v981 = vmax.f32 %v978, 0.0
    %v982 = vmax.f32 %v979, 0.0
    %v983 = vmax.f32 %v980, 0.0
    %v984 = vld [vmem:[#allocation11] sm:$0x7]
    %v986 = vperm.slane %v984, 0
    %v987 = vperm.slane %v984, 1
    %v988 = vperm.slane %v984, 2
    %v992 = vmul.f32 %v981, %v986
    %v993 = vmul.f32 %v982, %v987
    %v994 = vmul.f32 %v983, %v988
    %v995 = vadd.f32 %v992, %v993
    %vm996 = vcmask 359424
    %v997 = vsel %vm996, %v994, 0.0
    %v998 = vadd.f32 %v995, %v997
    %999 = vadd.xlane.f32.xlu0 %v998
    %v1000 = vpop.xlane.xlu0 %999
    %v1001 = vld [vmem:[#allocation2] sm:$0x1]
    %v1003 = vperm.slane %v1001, 0
    %v1005 = vadd.f32 %v1000, %v1003
    %vm1006 = vcmask 7168
    %1007 = vst.msk [vmem:[%s9] sm:$0xff] %vm1006, %v1005
    // Predicated region
    $region62: #{tpu_custom_call.1} parent=1 // pred_check
      _
    $region63: #{tpu_custom_call.1} parent=1 // pred_check_branch
      %1009 = sbr.rel (0) target = $region65
    $region64: #{tpu_custom_call.1} parent=1 // pred_region
      _
    $region65: #{tpu_custom_call.1} parent=1 // pred_fallthru
      _
    // Predicated region
    $region66: #{tpu_custom_call.1} parent=1 // pred_check
      _
    $region67: #{tpu_custom_call.1} parent=1 // pred_check_branch
      %1011 = sbr.rel (0) target = $region69
    $region68: #{tpu_custom_call.1} parent=1 // pred_region
      _
    $region69: #{tpu_custom_call.1} parent=1 // pred_fallthru
      _
    %1012 = vsyncpa [#allocation4], 1
    %1013 = vsyncpa [#allocation6], 1
    %1014 = vsyncpa [#allocation9], 1
    %1015 = vsyncpa [#allocation12], 1

</llo_original>
